<compile_context>
chip_gen: v5e
topology: v5e:2x2
jax: 0.10.0
libtpu: 0.0.40
codegen_flags: <defaults>
</compile_context>

<pallas_src>
import jax
import jax.numpy as jnp
from jax.experimental import pallas as pl
from jax.experimental.pallas import tpu as pltpu


def _mixup_ce_kernel(logits_ref, side_ref, loss_ref):
    """One batch tile: per-sample mixed cross-entropy loss."""
    x_nat = logits_ref[...]                            # [TB, C] native dtype
    x = x_nat.astype(jnp.float32)                      # f32 only for logsumexp

    # Numerically stable log-sum-exp over classes
    # (lane reduce -> XLU, exp/log -> EUP; off the VALU critical path).
    m = jnp.max(x, axis=-1, keepdims=True)                               # [TB,1]
    lse = m + jnp.log(jnp.sum(jnp.exp(x - m), axis=-1, keepdims=True))   # [TB,1]

    # Single packed side tile: columns = [ta, tb, bitcast(lam), pad] (int32).
    side = side_ref[...]                               # [TB, 4] int32
    ta = side[:, 0:1]                                  # [TB, 1]
    tb = side[:, 1:2]                                  # [TB, 1]
    lam = pltpu.bitcast(side[:, 2:3], jnp.float32)     # [TB, 1] f32

    # Target picks in the NATIVE dtype (exact: at most one non-zero per row),
    # then the lam-weighting per row in f32.
    col = jax.lax.broadcasted_iota(jnp.int32, x_nat.shape, 1)            # [TB,C]
    zero = jnp.zeros((), x_nat.dtype)
    pick_a = jnp.sum(jnp.where(col == ta, x_nat, zero), axis=-1,
                     keepdims=True).astype(jnp.float32)                  # [TB,1]
    pick_b = jnp.sum(jnp.where(col == tb, x_nat, zero), axis=-1,
                     keepdims=True).astype(jnp.float32)                  # [TB,1]
    pick = lam * pick_a + (1.0 - lam) * pick_b                           # [TB,1]

    # Per-sample mixed loss.  Rows past B in the last (partial) block are
    # clipped by the output writeback, so no explicit masking is needed.
    loss_ref[...] = lse - pick


def _choose_block_rows(batch, classes, itemsize, block_rows):
    """Byte-budgeted batch tile, rounded to the packed-sublane multiple."""
    sublane = 16 if itemsize == 2 else 8
    if block_rows is None:
        target_tile_bytes = 2 * 1024 * 1024            # ~2 MiB logits / buffer
        rows = target_tile_bytes // max(1, classes * itemsize)
    else:
        rows = block_rows
    rows = max(sublane, (rows // sublane) * sublane)

    # Cap so (2x double-buffered native tile + ~4 [TB,C] f32 temps + side/out)
    # stays well under v7x's 64 MiB physical VMEM.
    vmem_budget = 40 * 1024 * 1024
    per_row = 2 * classes * itemsize + 4 * classes * 4 + 2 * (4 * 4 + 4)
    max_rows = max(sublane, (vmem_budget // per_row // sublane) * sublane)
    rows = min(rows, max_rows)

    if rows >= batch:
        return batch                                    # full-extent block
    return rows


def mixup_loss(logits, target, *, block_rows=None):
    """Pallas implementation of MixUpLoss.forward with a CE criterion.

    `target` is either a list/tuple (target_a, target_b, lam) or a single
    integer-label array, mirroring the PyTorch module's forward.
    `logits` may be any float dtype (bf16/f32); no host-side up-cast.
    """
    B, C = logits.shape
    if isinstance(target, (list, tuple)):
        ta, tb, lam = target
    else:
        # plain (non-mixup) path: lam = 1, both targets identical
        ta, tb, lam = target, target, jnp.ones((B,), jnp.float32)

    ta = jnp.asarray(ta, jnp.int32).reshape(B)
    tb = jnp.asarray(tb, jnp.int32).reshape(B)
    lam = jnp.broadcast_to(jnp.asarray(lam, jnp.float32), (B,))
    lam_bits = jax.lax.bitcast_convert_type(lam, jnp.int32)
    # One packed side input -> a single small side DMA per grid step.
    side = jnp.stack([ta, tb, lam_bits, jnp.zeros_like(ta)], axis=-1)   # (B,4) i32

    itemsize = jnp.dtype(logits.dtype).itemsize
    tb_rows = _choose_block_rows(B, C, itemsize, block_rows)
    nb = pl.cdiv(B, tb_rows)

    cost = pl.CostEstimate(
        flops=6 * B * C,
        transcendentals=B * (C + 1),
        bytes_accessed=B * C * itemsize + B * 4 * 4 + B * 4,
    )

    per_sample = pl.pallas_call(
        _mixup_ce_kernel,
        out_shape=jax.ShapeDtypeStruct((B, 1), jnp.float32),
        grid_spec=pltpu.PrefetchScalarGridSpec(
            num_scalar_prefetch=0,
            grid=(nb,),
            in_specs=[
                pl.BlockSpec((tb_rows, C), lambda i: (i, 0)),   # logits (native)
                pl.BlockSpec((tb_rows, 4), lambda i: (i, 0)),   # packed ta/tb/lam
            ],
            out_specs=pl.BlockSpec((tb_rows, 1), lambda i: (i, 0)),
        ),
        compiler_params=pltpu.CompilerParams(
            dimension_semantics=("parallel",),      # blocks are independent
            vmem_limit_bytes=48 * 1024 * 1024,
        ),
        cost_estimate=cost,
    )(logits, side)

    # Final mean in plain XLA (B-element reduction) outside the kernel.
    return jnp.mean(per_sample)


def _mixup_loss_ref(logits, target):
    """Pure-JAX reference for correctness checking (f32 math, like the kernel)."""
    x = logits.astype(jnp.float32)

    def ce(x, t):
        lse = jax.nn.logsumexp(x, axis=-1)
        picked = jnp.take_along_axis(x, t[:, None].astype(jnp.int32), axis=-1)[:, 0]
        return lse - picked

    if isinstance(target, (list, tuple)):
        ta, tb, lam = target
        lam = jnp.broadcast_to(jnp.asarray(lam, jnp.float32), (x.shape[0],))
        return jnp.mean(lam * ce(x, ta) + (1.0 - lam) * ce(x, tb))
    return jnp.mean(ce(x, target))


if __name__ == "__main__":
    key = jax.random.PRNGKey(0)
    B, C = 12, 32                      # B=12 with block_rows=8 -> 2 blocks, partial last
    k1, k2, k3, k4 = jax.random.split(key, 4)

    logits_f32 = jax.random.normal(k1, (B, C), dtype=jnp.float32)
    logits_bf16 = logits_f32.astype(jnp.bfloat16)
    target_a = jax.random.randint(k2, (B,), 0, C, dtype=jnp.int32)
    target_b = jax.random.randint(k3, (B,), 0, C, dtype=jnp.int32)
    lam = jax.random.uniform(k4, (B,), dtype=jnp.float32)

    # mixup path, tiled over batch with a partial last block
    loss_mix = mixup_loss(logits_f32, [target_a, target_b, lam], block_rows=8)
    jax.block_until_ready(loss_mix)

    # mixup path, byte-budgeted default tile (single full-extent block here)
    loss_mix_auto = mixup_loss(logits_f32, [target_a, target_b, lam])
    jax.block_until_ready(loss_mix_auto)

    # plain path (single target tensor)
    loss_plain = mixup_loss(logits_f32, target_a)
    jax.block_until_ready(loss_plain)

    # native bf16 logits (no host-side up-cast; bf16-native pick path)
    loss_bf16 = mixup_loss(logits_bf16, [target_a, target_b, lam], block_rows=8)
    jax.block_until_ready(loss_bf16)

    # tiny class count (braindecode-typical), exercises full-extent small-C block
    k5, k6 = jax.random.split(k1)
    logits_small = jax.random.normal(k5, (8, 4), dtype=jnp.float32)
    tgt_small = jax.random.randint(k6, (8,), 0, 4, dtype=jnp.int32)
    loss_small = mixup_loss(logits_small, tgt_small)
    jax.block_until_ready(loss_small)

    ref_mix = _mixup_loss_ref(logits_f32, [target_a, target_b, lam])
    ref_plain = _mixup_loss_ref(logits_f32, target_a)
    ref_bf16 = _mixup_loss_ref(logits_bf16, [target_a, target_b, lam])
    ref_small = _mixup_loss_ref(logits_small, tgt_small)

    assert jnp.allclose(loss_mix, ref_mix, atol=1e-5, rtol=1e-5), (loss_mix, ref_mix)
    assert jnp.allclose(loss_mix_auto, ref_mix, atol=1e-5, rtol=1e-5), (loss_mix_auto, ref_mix)
    assert jnp.allclose(loss_plain, ref_plain, atol=1e-5, rtol=1e-5), (loss_plain, ref_plain)
    assert jnp.allclose(loss_bf16, ref_bf16, atol=1e-4, rtol=1e-4), (loss_bf16, ref_bf16)
    assert jnp.allclose(loss_small, ref_small, atol=1e-5, rtol=1e-5), (loss_small, ref_small)

    print("KERNEL_OK")
</pallas_src>

<mosaic_0001>
module attributes {stable_mosaic.version = 11 : i64} {
  func.func @_mixup_ce_kernel(%arg0: i32, %arg1: memref<8x32xf32, #tpu.memory_space<vmem>>, %arg2: memref<8x4xi32, #tpu.memory_space<vmem>>, %arg3: memref<8x1xf32, #tpu.memory_space<vmem>>) attributes {dimension_semantics = [#tpu.dimension_semantics<parallel>], iteration_bounds = array<i64: 2>, scalar_prefetch = 0 : i64, scratch_operands = 0 : i64, tpu.core_type = #tpu.core_type<tc>, window_params = [{transform_indices = @transform_0, window_bounds = array<i64: 8, 32>}, {transform_indices = @transform_1, window_bounds = array<i64: 8, 4>}, {transform_indices = @transform_2, window_bounds = array<i64: 8, 1>}]} {
    %c0 = arith.constant 0 : index
    %c0_0 = arith.constant 0 : index
    %0 = vector.load %arg1[%c0, %c0_0] : memref<8x32xf32, #tpu.memory_space<vmem>>, vector<8x32xf32>
    %cst = arith.constant dense<0xFF800000> : vector<8xf32>
    %1 = vector.multi_reduction <maximumf>, %0, %cst [1] : vector<8x32xf32> to vector<8xf32>
    %2 = vector.shape_cast %1 : vector<8xf32> to vector<8x1xf32>
    %3 = vector.broadcast %2 : vector<8x1xf32> to vector<8x32xf32>
    %4 = arith.subf %0, %3 : vector<8x32xf32>
    %5 = math.exp %4 : vector<8x32xf32>
    %cst_1 = arith.constant dense<0.000000e+00> : vector<8xf32>
    %6 = vector.multi_reduction <add>, %5, %cst_1 [1] : vector<8x32xf32> to vector<8xf32>
    %7 = vector.shape_cast %6 : vector<8xf32> to vector<8x1xf32>
    %8 = math.log %7 : vector<8x1xf32>
    %9 = arith.addf %2, %8 : vector<8x1xf32>
    %c0_2 = arith.constant 0 : index
    %c0_3 = arith.constant 0 : index
    %10 = vector.load %arg2[%c0_2, %c0_3] : memref<8x4xi32, #tpu.memory_space<vmem>>, vector<8x4xi32>
    %11 = vector.extract_strided_slice %10 {offsets = [0, 0], sizes = [8, 1], strides = [1, 1]} : vector<8x4xi32> to vector<8x1xi32>
    %12 = vector.extract_strided_slice %10 {offsets = [0, 1], sizes = [8, 1], strides = [1, 1]} : vector<8x4xi32> to vector<8x1xi32>
    %13 = vector.extract_strided_slice %10 {offsets = [0, 2], sizes = [8, 1], strides = [1, 1]} : vector<8x4xi32> to vector<8x1xi32>
    %14 = tpu.bitcast %13 : vector<8x1xi32> -> vector<8x1xf32>
    %15 = tpu.iota {dimensions = array<i32: 1>} : vector<8x32xi32>
    %16 = vector.broadcast %11 : vector<8x1xi32> to vector<8x32xi32>
    %17 = arith.cmpi eq, %15, %16 : vector<8x32xi32>
    %cst_4 = arith.constant 0.000000e+00 : f32
    %18 = vector.broadcast %cst_4 : f32 to vector<8x32xf32>
    %19 = arith.select %17, %0, %18 : vector<8x32xi1>, vector<8x32xf32>
    %cst_5 = arith.constant dense<0.000000e+00> : vector<8xf32>
    %20 = vector.multi_reduction <add>, %19, %cst_5 [1] : vector<8x32xf32> to vector<8xf32>
    %21 = vector.shape_cast %20 : vector<8xf32> to vector<8x1xf32>
    %22 = vector.broadcast %12 : vector<8x1xi32> to vector<8x32xi32>
    %23 = arith.cmpi eq, %15, %22 : vector<8x32xi32>
    %cst_6 = arith.constant 0.000000e+00 : f32
    %24 = vector.broadcast %cst_6 : f32 to vector<8x32xf32>
    %25 = arith.select %23, %0, %24 : vector<8x32xi1>, vector<8x32xf32>
    %cst_7 = arith.constant dense<0.000000e+00> : vector<8xf32>
    %26 = vector.multi_reduction <add>, %25, %cst_7 [1] : vector<8x32xf32> to vector<8xf32>
    %27 = vector.shape_cast %26 : vector<8xf32> to vector<8x1xf32>
    %28 = arith.mulf %14, %21 : vector<8x1xf32>
    %cst_8 = arith.constant 1.000000e+00 : f32
    %29 = vector.broadcast %cst_8 : f32 to vector<8x1xf32>
    %30 = arith.subf %29, %14 : vector<8x1xf32>
    %31 = arith.mulf %30, %27 : vector<8x1xf32>
    %32 = arith.addf %28, %31 : vector<8x1xf32>
    %33 = arith.subf %9, %32 : vector<8x1xf32>
    %c0_9 = arith.constant 0 : index
    %c0_10 = arith.constant 0 : index
    %34 = vector.load %arg3[%c0_9, %c0_10] : memref<8x1xf32, #tpu.memory_space<vmem>>, vector<8x1xf32>
    tpu.vector_store %arg3[%c0_9, %c0_10], %33 {strides = array<i32>} : memref<8x1xf32, #tpu.memory_space<vmem>>, vector<8x1xf32>,
    return
  }
  func.func @transform_0(%arg0: i32) -> (i32, i32) {
    %c0_i32 = arith.constant 0 : i32
    %c0_i32_0 = arith.constant 0 : i32
    return %arg0, %c0_i32 : i32, i32
  }
  func.func @transform_1(%arg0: i32) -> (i32, i32) {
    %c0_i32 = arith.constant 0 : i32
    %c0_i32_0 = arith.constant 0 : i32
    return %arg0, %c0_i32 : i32, i32
  }
  func.func @transform_2(%arg0: i32) -> (i32, i32) {
    %c0_i32 = arith.constant 0 : i32
    %c0_i32_0 = arith.constant 0 : i32
    return %arg0, %c0_i32 : i32, i32
  }
}

</mosaic_0001>

<llo_original>
// kernel: tpu_custom_call.1
$region0: #{tpu_custom_call.1}
  #allocation0 [shape = 'u32[]', space=smem, size = 0x4, offset = 0x4, fixed_abs, tag = 'smem constant byte address 0x4 - core index']
  #allocation1 [shape = 'u32[72,128]{1,0:T(1,128)}', space=vmem, size = 0x9000, scoped, tag = 'internal scratch']
  %s0 = inlined_call_operand.vmem [shape: f32[12,32], index: 0, kind: input, shape index: {}]
  %s1 = inlined_call_operand.vmem [shape: s32[12,4], index: 1, kind: input, shape index: {}]
  %s2 = inlined_call_operand.vmem [shape: f32[12,1], index: 2, kind: output, shape index: {}]
  %s3 = sld [smem:[#allocation0]]
  $region41: #{tpu_custom_call.1} parent=0
    _
  %s5 = ssub.s32 1, %s3
  %s6 = scalar_select 0, %s5, %s3
  loop: start=0, step=1, limit=4
  $region2: #{tpu_custom_call.1} parent=0 // loop_pre_header
    _
  $region3: #{tpu_custom_call.1} parent=0 // loop_header
    %s8 = sphi 0, %s12
    %p9 = scmp.ge.s32.totalorder %s8, 4
    %s18 = sphi 0, %s20
    %s21 = sphi 0, %s18
    %s22 = sphi 0, %s21
    %s38 = sphi 0, %s22
    %s44 = sphi 0, %s46
    %s47 = sphi 0, %s44
    %s48 = sphi 0, %s47
    %s64 = sphi 0, %s48
    %s70 = sphi 0, %s72
    %s73 = sphi 0, %s70
    %s74 = sphi 0, %s73
    %s90 = sphi 0, %s74
  $region4: #{tpu_custom_call.1} parent=0 // loop_header_branch
    %11 = sbr.rel (%p9) target = $region8
  $region5: #{tpu_custom_call.1} parent=0 // loop_body
    %s13 = ssub.s32 %s8, 1
    %s14 = ssub.s32 %s8, 2
    %s15 = sadd.s32 %s8, 1
    %s16 = ssub.s32 %s8, %s15
    %p17 = scmp.eq.s32.totalorder %s16, 0
    %s19 = sadd.s32 %s18, 1
    %s20 = scalar_select %p17, %s18, %s19
    %p23 = pneg %p17
    %p24 = scmp.eq.s32.totalorder %s8, 1
    %p25 = por %p23, %p24
    %p26 = scmp.ne.s32.totalorder %s18, %s21
    %p27 = scmp.eq.s32.totalorder %s8, 0
    %p28 = por %p26, %p27
    %p29 = scmp.ne.s32.totalorder %s18, %s21
    %p30 = scmp.eq.s32.totalorder %s13, 1
    %p31 = por %p29, %p30
    %p32 = scmp.ne.s32.totalorder %s21, %s22
    %p33 = scmp.eq.s32.totalorder %s13, 0
    %p34 = por %p32, %p33
    %p35 = scmp.ne.s32.totalorder %s21, %s22
    %p36 = scmp.eq.s32.totalorder %s14, 1
    %p37 = por %p35, %p36
    %p39 = scmp.ne.s32.totalorder %s22, %s38
    %p40 = scmp.eq.s32.totalorder %s14, 0
    %p41 = por %p39, %p40
    %s42 = ssub.s32 %s8, %s15
    %p43 = scmp.eq.s32.totalorder %s42, 0
    %s45 = sadd.s32 %s44, 1
    %s46 = scalar_select %p43, %s44, %s45
    %p49 = pneg %p43
    %p50 = scmp.eq.s32.totalorder %s8, 1
    %p51 = por %p49, %p50
    %p52 = scmp.ne.s32.totalorder %s44, %s47
    %p53 = scmp.eq.s32.totalorder %s8, 0
    %p54 = por %p52, %p53
    %p55 = scmp.ne.s32.totalorder %s44, %s47
    %p56 = scmp.eq.s32.totalorder %s13, 1
    %p57 = por %p55, %p56
    %p58 = scmp.ne.s32.totalorder %s47, %s48
    %p59 = scmp.eq.s32.totalorder %s13, 0
    %p60 = por %p58, %p59
    %p61 = scmp.ne.s32.totalorder %s47, %s48
    %p62 = scmp.eq.s32.totalorder %s14, 1
    %p63 = por %p61, %p62
    %p65 = scmp.ne.s32.totalorder %s48, %s64
    %p66 = scmp.eq.s32.totalorder %s14, 0
    %p67 = por %p65, %p66
    %s68 = ssub.s32 %s8, %s15
    %p69 = scmp.eq.s32.totalorder %s68, 0
    %s71 = sadd.s32 %s70, 1
    %s72 = scalar_select %p69, %s70, %s71
    %p75 = pneg %p69
    %p76 = scmp.eq.s32.totalorder %s8, 1
    %p77 = por %p75, %p76
    %p78 = scmp.ne.s32.totalorder %s70, %s73
    %p79 = scmp.eq.s32.totalorder %s8, 0
    %p80 = por %p78, %p79
    %p81 = scmp.ne.s32.totalorder %s70, %s73
    %p82 = scmp.eq.s32.totalorder %s13, 1
    %p83 = por %p81, %p82
    %p84 = scmp.ne.s32.totalorder %s73, %s74
    %p85 = scmp.eq.s32.totalorder %s13, 0
    %p86 = por %p84, %p85
    %p87 = scmp.ne.s32.totalorder %s73, %s74
    %p88 = scmp.eq.s32.totalorder %s14, 1
    %p89 = por %p87, %p88
    %p91 = scmp.ne.s32.totalorder %s74, %s90
    %p92 = scmp.eq.s32.totalorder %s14, 0
    %p93 = por %p91, %p92
    %p94 = scmp.le.s32.totalorder 1, %s8
    %p95 = scmp.lt.s32.totalorder %s8, 3
    %p96 = pnand %p94, %p95
    %p97 = pneg %p96
    // Predicated region
    $region9: #{tpu_custom_call.1} parent=5 // pred_check
      _
    $region10: #{tpu_custom_call.1} parent=5 // pred_check_branch
      %99 = sbr.rel (%p96) target = $region12
    $region11: #{tpu_custom_call.1} parent=5 // pred_region
      %s100 = ssub.s32 %s8, 1
    $region12: #{tpu_custom_call.1} parent=5 // pred_fallthru
      _
    %p101 = scmp.lt.s32.totalorder %s8, 2
    // Predicated region
    $region13: #{tpu_custom_call.1} parent=5 // pred_check
      %p102 = pneg %p101
    $region14: #{tpu_custom_call.1} parent=5 // pred_check_branch
      %104 = sbr.rel (%p102) target = $region16
    $region15: #{tpu_custom_call.1} parent=5 // pred_region
      // Predicated region
      $region17: #{tpu_custom_call.1} parent=15 // pred_check
        %p105 = pneg %p28
      $region18: #{tpu_custom_call.1} parent=15 // pred_check_branch
        %107 = sbr.rel (%p105) target = $region20
      $region19: #{tpu_custom_call.1} parent=15 // pred_region
        %p108 = scmp.lt.s32.totalorder %s8, 1
        %s109 = scalar_select %p108, %s8, 1
        %s110 = smul.addr %s109, 8
        %s111 = scalar_lea.vmem %s0, %s110
      $region20: #{tpu_custom_call.1} parent=15 // pred_fallthru
        _
      // Predicated region
      $region21: #{tpu_custom_call.1} parent=15 // pred_check
        %p112 = pneg %p54
      $region22: #{tpu_custom_call.1} parent=15 // pred_check_branch
        %114 = sbr.rel (%p112) target = $region24
      $region23: #{tpu_custom_call.1} parent=15 // pred_region
        %p115 = scmp.lt.s32.totalorder %s8, 1
        %s116 = scalar_select %p115, %s8, 1
        %s117 = smul.addr %s116, 8
        %s118 = scalar_lea.vmem %s1, %s117
      $region24: #{tpu_custom_call.1} parent=15 // pred_fallthru
        _
    $region16: #{tpu_custom_call.1} parent=5 // pred_fallthru
      _
    %p119 = scmp.le.s32.totalorder 1, %s8
    %p120 = scmp.lt.s32.totalorder %s8, 3
    %p121 = pnand %p119, %p120
    %p122 = pneg %p121
    // Predicated region
    $region25: #{tpu_custom_call.1} parent=5 // pred_check
      _
    $region26: #{tpu_custom_call.1} parent=5 // pred_check_branch
      %124 = sbr.rel (%p121) target = $region28
    $region27: #{tpu_custom_call.1} parent=5 // pred_region
      %s125 = ssub.s32 %s8, 1
      %p126 = scmp.lt.s32.totalorder %s13, 1
      %s127 = scalar_select %p126, %s13, 1
      %s128 = smul.addr %s127, 8
      %s129 = scalar_lea.vmem %s0, %s128
      %p130 = pneg %p34
      %p131 = pneg %p31
      %p132 = scmp.lt.s32.totalorder %s13, 1
      %s133 = scalar_select %p132, %s13, 1
      %s134 = smul.addr %s133, 8
      %s135 = scalar_lea.vmem %s1, %s134
      %p136 = pneg %p60
      %p137 = pneg %p57
      %p138 = pneg %p86
      %p139 = pneg %p83
      %p140 = scmp.lt.s32.totalorder %s13, 1
      %s141 = scalar_select %p140, %s13, 1
      %s142 = smul.addr %s141, 8
      %s143 = scalar_lea.vmem %s2, %s142
      %p144 = scmp.lt.s32.totalorder %s13, 1
      %s145 = scalar_select %p144, %s13, 1
      %s146 = smul.addr %s145, 8
      %s147 = scalar_lea.vmem %s0, %s146
      %p148 = scmp.lt.s32.totalorder %s13, 1
      %s149 = scalar_select %p148, %s13, 1
      %s150 = smul.addr %s149, 8
      %s151 = scalar_lea.vmem %s1, %s150
      %p152 = scmp.lt.s32.totalorder %s13, 1
      %s153 = scalar_select %p152, %s13, 1
      %s154 = smul.addr %s153, 8
      %s155 = scalar_lea.vmem %s2, %s154
      %v156 = vld [vmem:[%s147] sm:$0xff]
      %vm157 = vcmask 261120
      %v158 = vsel %vm157, %v156, -inf
      %159 = vmax.xlane.f32.xlu0 %v158
      %v160 = vpop.xlane.xlu0 %159
      %v161 = vsub.f32 %v156, %v160
      %v162 = vmul.f32 %v161, 1.442695
      %v163 = vpow.pop %v162
      %v164 = vsel %vm157, %v163, 0.0
      %165 = vadd.xlane.f32.xlu0 %v164
      %v166 = vpop.xlane.xlu0 %165
      %v167 = vlog2.pop %v166
      %v168 = vmul.f32 %v167, 0.6931472
      %v169 = vadd.f32 %v160, %v168
      %v170 = vld [vmem:[%s151] sm:$0xff]
      %v172 = vlaneseq
      %v173 = vand.u32 %v172, 127
      %174 = vset.pattern.permute.xlu0 0
      %175 = vperm.xlu0 %174, %v170
      %v176 = vpop.permute.xlu0 %175
      %vm177 = vcmp.eq.s32.totalorder %v173, %v176
      %v178 = vsel %vm177, %v156, 0.0
      %v179 = vsel %vm157, %v178, 0.0
      %180 = vadd.xlane.f32.xlu0 %v179
      %v181 = vpop.xlane.xlu0 %180
      %182 = vset.pattern.permute.xlu0 1
      %183 = vperm.xlu0 %182, %v170
      %v184 = vpop.permute.xlu0 %183
      %vm185 = vcmp.eq.s32.totalorder %v173, %v184
      %v186 = vsel %vm185, %v156, 0.0
      %v187 = vsel %vm157, %v186, 0.0
      %188 = vadd.xlane.f32.xlu0 %v187
      %v189 = vpop.xlane.xlu0 %188
      %v190 = vmul.f32 %v170, %v181
      %v191 = vsub.f32 1.0, %v170
      %v192 = vmul.f32 %v191, %v189
      %v193 = vadd.f32 %v190, %v192
      %v194 = vsub.f32 %v169, %v193
      %196 = vrot.lane.b32.xlu0 %v194, 126
      %v197 = vpop.permute.xlu0 %196
      %vm199 = vcmask 7168
      %200 = vst.msk [vmem:[%s155] sm:$0xff] %vm199, %v197
      %p201 = scmp.lt.s32.totalorder %s13, 1
      %s202 = scalar_select %p201, %s13, 1
      %s203 = smul.addr %s202, 8
      %s204 = scalar_lea.vmem %s2, %s203
      // Predicated region
      $region29: #{tpu_custom_call.1} parent=27 // pred_check
        %p205 = pneg %p83
      $region30: #{tpu_custom_call.1} parent=27 // pred_check_branch
        %207 = sbr.rel (%p205) target = $region32
      $region31: #{tpu_custom_call.1} parent=27 // pred_region
        _
      $region32: #{tpu_custom_call.1} parent=27 // pred_fallthru
        _
    $region28: #{tpu_custom_call.1} parent=5 // pred_fallthru
      _
    %p208 = scmp.le.s32.totalorder 2, %s8
    // Predicated region
    $region33: #{tpu_custom_call.1} parent=5 // pred_check
      %p209 = pneg %p208
    $region34: #{tpu_custom_call.1} parent=5 // pred_check_branch
      %211 = sbr.rel (%p209) target = $region36
    $region35: #{tpu_custom_call.1} parent=5 // pred_region
      %s212 = ssub.s32 %s8, 2
      // Predicated region
      $region37: #{tpu_custom_call.1} parent=35 // pred_check
        %p213 = pneg %p89
      $region38: #{tpu_custom_call.1} parent=35 // pred_check_branch
        %215 = sbr.rel (%p213) target = $region40
      $region39: #{tpu_custom_call.1} parent=35 // pred_region
        %p216 = scmp.lt.s32.totalorder %s14, 1
        %s217 = scalar_select %p216, %s14, 1
        %s218 = smul.addr %s217, 8
        %s219 = scalar_lea.vmem %s2, %s218
      $region40: #{tpu_custom_call.1} parent=35 // pred_fallthru
        _
    $region36: #{tpu_custom_call.1} parent=5 // pred_fallthru
      _
  $region6: #{tpu_custom_call.1} parent=0 // loop_footer
    %s12 = sadd.s32 1, %s8
  $region7: #{tpu_custom_call.1} parent=0 // loop_footer_branch
    %7 = sbr.rel target = $region3
  $region8: #{tpu_custom_call.1} parent=0 // loop_exit
    _

</llo_original>
